<compile_context>
chip_gen: v6e
topology: v6e:2x2x1
jax: 0.10.0
libtpu: 0.0.40
codegen_flags: <defaults>
</compile_context>

<pallas_src>
import functools

import jax
import jax.numpy as jnp
import numpy as np
from jax.experimental import pallas as pl
from jax.experimental.pallas import tpu as pltpu


def _fft2_mag_kernel(x_ref, cwsw_ref, chsh_ref, o_ref, *, tb, h, w):
    # x_ref    : (tb*h, w)  bf16  -- tb batch elements with rows flattened
    # cwsw_ref : (w, 2w)    bf16  -- [Cw | Sw], fftshift pre-folded (cols rolled)
    # chsh_ref : (2h, h)    bf16  -- [Ch ; Sh], fftshift pre-folded (rows rolled)
    # o_ref    : (tb, h, w) f32   -- fftshifted magnitude spectrum

    # Stage 1: column DFT for all tb*h rows at once:  T = X @ [Cw | Sw]
    #   T[:, :w] = X @ Cw = A,   T[:, w:] = X @ Sw = B
    t = jnp.dot(x_ref[...], cwsw_ref[...],
                preferred_element_type=jnp.float32)            # (tb*h, 2w) f32
    t = t.reshape(tb, h, 2 * w).astype(jnp.bfloat16)           # (tb, h, 2w)

    # Stage 2: row DFT, batched over tb:  R_b = [Ch ; Sh] @ T_b
    chsh = jnp.broadcast_to(chsh_ref[...], (tb, 2 * h, h))
    r = jnp.einsum("bgm,bmn->bgn", chsh, t,
                   preferred_element_type=jnp.float32)         # (tb, 2h, 2w)

    # Y = (Ch - i Sh) X (Cw - i Sw):
    #   Re  = Ch@A - Sh@B          = r[:, :h, :w] - r[:, h:, w:]
    #   |Im|= Ch@B + Sh@A          = r[:, :h, w:] + r[:, h:, :w]
    # (the sign of Im is irrelevant for the magnitude)
    re = r[:, :h, :w] - r[:, h:, w:]
    im = r[:, :h, w:] + r[:, h:, :w]
    o_ref[...] = jnp.sqrt(re * re + im * im + 1e-15)


def _dft_tables(h, w):
    """Fused DFT tables with fftshift baked in, as bf16."""
    kh = np.arange(h)
    ang_h = 2.0 * np.pi * np.outer(kh, kh) / h
    ch, sh = np.cos(ang_h), np.sin(ang_h)           # (h, h), symmetric
    kw = np.arange(w)
    ang_w = 2.0 * np.pi * np.outer(kw, kw) / w
    cw, sw = np.cos(ang_w), np.sin(ang_w)           # (w, w), symmetric

    # fftshift = roll of the *output* frequency index by n//2.  Output rows
    # come from Ch/Sh rows; output cols come from Cw/Sw columns.
    ch = np.roll(ch, h // 2, axis=0)
    sh = np.roll(sh, h // 2, axis=0)
    cw = np.roll(cw, w // 2, axis=1)
    sw = np.roll(sw, w // 2, axis=1)

    chsh = np.concatenate([ch, sh], axis=0)         # (2h, h)
    cwsw = np.concatenate([cw, sw], axis=1)         # (w, 2w)
    return (jnp.asarray(chsh, dtype=jnp.bfloat16),
            jnp.asarray(cwsw, dtype=jnp.bfloat16))


def fft2_forward(x, *, batch_tile=4):
    """x: [B, H, W] float -> [B, H, W, 1] float32 (fftshifted magnitude)."""
    b, h, w = x.shape
    tb = max(1, min(batch_tile, b))
    bp = ((b + tb - 1) // tb) * tb                  # pad batch to multiple of tb
    if bp != b:
        x = jnp.concatenate(
            [x, jnp.zeros((bp - b, h, w), dtype=x.dtype)], axis=0)

    chsh, cwsw = _dft_tables(h, w)
    # bf16 operands (single-pass MXU, halved input DMA); f32 accumulation
    # inside the kernel via preferred_element_type.
    x2 = x.reshape(bp * h, w).astype(jnp.bfloat16)

    kernel = functools.partial(_fft2_mag_kernel, tb=tb, h=h, w=w)
    out = pl.pallas_call(
        kernel,
        out_shape=jax.ShapeDtypeStruct((bp, h, w), jnp.float32),
        grid_spec=pltpu.PrefetchScalarGridSpec(
            num_scalar_prefetch=0,
            grid=(bp // tb,),
            in_specs=[
                pl.BlockSpec((tb * h, w), lambda i: (i, 0)),     # batch tile
                pl.BlockSpec((w, 2 * w), lambda i: (0, 0)),      # [Cw|Sw] const
                pl.BlockSpec((2 * h, h), lambda i: (0, 0)),      # [Ch;Sh] const
            ],
            out_specs=pl.BlockSpec((tb, h, w), lambda i: (i, 0, 0)),
        ),
        compiler_params=pltpu.CompilerParams(
            dimension_semantics=("parallel",)),
    )(x2, cwsw, chsh)

    # unsqueeze(-1) and drop batch padding — pure glue.
    return out[:b, :, :, None]


def _reference(x):
    y = jnp.fft.fft2(x.astype(jnp.complex64), axes=(-2, -1))
    mag = jnp.sqrt(jnp.real(y) ** 2 + jnp.imag(y) ** 2 + 1e-15)
    mag = jnp.fft.fftshift(mag, axes=(-2, -1))
    return mag[..., None]


if __name__ == "__main__":
    key = jax.random.PRNGKey(0)
    B, H, W = 8, 16, 16
    x = jax.random.normal(key, (B, H, W), dtype=jnp.float32)

    out = jax.block_until_ready(fft2_forward(x, batch_tile=4))

    ref = _reference(x)
    assert out.shape == (B, H, W, 1), out.shape
    # bf16-operand / f32-accumulate DFT: check normalized max error.
    err = float(jnp.max(jnp.abs(out - ref)))
    scale = float(jnp.max(jnp.abs(ref)))
    if err > 2e-2 * scale:
        raise AssertionError(
            f"Pallas FFT2 mismatch: max|err|={err:.4f}, scale={scale:.4f}")
    print("KERNEL_OK")
</pallas_src>

<mosaic_0001>
module attributes {stable_mosaic.version = 11 : i64} {
  func.func @_fft2_mag_kernel(%arg0: i32, %arg1: memref<64x16xbf16, #tpu.memory_space<vmem>>, %arg2: memref<16x32xbf16, #tpu.memory_space<vmem>>, %arg3: memref<32x16xbf16, #tpu.memory_space<vmem>>, %arg4: memref<4x16x16xf32, #tpu.memory_space<vmem>>) attributes {dimension_semantics = [#tpu.dimension_semantics<parallel>], iteration_bounds = array<i64: 2>, scalar_prefetch = 0 : i64, scratch_operands = 0 : i64, tpu.core_type = #tpu.core_type<tc>, window_params = [{transform_indices = @transform_0, window_bounds = array<i64: 64, 16>}, {pipeline_mode = #tpu.pipeline_mode<synchronous>, transform_indices = @transform_1, window_bounds = array<i64: 16, 32>}, {pipeline_mode = #tpu.pipeline_mode<synchronous>, transform_indices = @transform_2, window_bounds = array<i64: 32, 16>}, {transform_indices = @transform_3, window_bounds = array<i64: 4, 16, 16>}]} {
    %c0 = arith.constant 0 : index
    %c0_0 = arith.constant 0 : index
    %0 = vector.load %arg1[%c0, %c0_0] : memref<64x16xbf16, #tpu.memory_space<vmem>>, vector<64x16xbf16>
    %c0_1 = arith.constant 0 : index
    %c0_2 = arith.constant 0 : index
    %1 = vector.load %arg2[%c0_1, %c0_2] : memref<16x32xbf16, #tpu.memory_space<vmem>>, vector<16x32xbf16>
    %cst = arith.constant dense<0.000000e+00> : vector<64x32xf32>
    %2 = tpu.matmul %0, %1, %cst {dimension_numbers = #tpu.dot_dimension_numbers<[1], [0], [0], [1], [0, 0, 1, 1], [], []>} : vector<64x16xbf16>, vector<16x32xbf16>, vector<64x32xf32> -> vector<64x32xf32>
    %3 = vector.shape_cast %2 : vector<64x32xf32> to vector<4x16x32xf32>
    %4 = arith.truncf %3 : vector<4x16x32xf32> to vector<4x16x32xbf16>
    %c0_3 = arith.constant 0 : index
    %c0_4 = arith.constant 0 : index
    %5 = vector.load %arg3[%c0_3, %c0_4] : memref<32x16xbf16, #tpu.memory_space<vmem>>, vector<32x16xbf16>
    %6 = vector.shape_cast %5 : vector<32x16xbf16> to vector<1x32x16xbf16>
    %7 = vector.broadcast %6 : vector<1x32x16xbf16> to vector<4x32x16xbf16>
    "tpu.trace_start"() <{level = 10 : i32, message = "bgm,bmn->bgn"}> : () -> ()
    %cst_5 = arith.constant dense<0.000000e+00> : vector<4x32x32xf32>
    %8 = tpu.matmul %7, %4, %cst_5 {dimension_numbers = #tpu.dot_dimension_numbers<[2], [1], [1], [2], [0, 0, 0, 1, 1, 2], [0], [0]>} : vector<4x32x16xbf16>, vector<4x16x32xbf16>, vector<4x32x32xf32> -> vector<4x32x32xf32>
    "tpu.trace_stop"() : () -> ()
    %9 = vector.extract_strided_slice %8 {offsets = [0, 0, 0], sizes = [4, 16, 16], strides = [1, 1, 1]} : vector<4x32x32xf32> to vector<4x16x16xf32>
    %10 = vector.extract_strided_slice %8 {offsets = [0, 16, 16], sizes = [4, 16, 16], strides = [1, 1, 1]} : vector<4x32x32xf32> to vector<4x16x16xf32>
    %11 = arith.subf %9, %10 : vector<4x16x16xf32>
    %12 = vector.extract_strided_slice %8 {offsets = [0, 0, 16], sizes = [4, 16, 16], strides = [1, 1, 1]} : vector<4x32x32xf32> to vector<4x16x16xf32>
    %13 = vector.extract_strided_slice %8 {offsets = [0, 16, 0], sizes = [4, 16, 16], strides = [1, 1, 1]} : vector<4x32x32xf32> to vector<4x16x16xf32>
    %14 = arith.addf %12, %13 : vector<4x16x16xf32>
    %15 = arith.mulf %11, %11 : vector<4x16x16xf32>
    %16 = arith.mulf %14, %14 : vector<4x16x16xf32>
    %17 = arith.addf %15, %16 : vector<4x16x16xf32>
    %cst_6 = arith.constant 1.000000e-15 : f32
    %18 = vector.broadcast %cst_6 : f32 to vector<4x16x16xf32>
    %19 = arith.addf %17, %18 : vector<4x16x16xf32>
    %20 = math.sqrt %19 : vector<4x16x16xf32>
    %c0_7 = arith.constant 0 : index
    %c0_8 = arith.constant 0 : index
    %c0_9 = arith.constant 0 : index
    %21 = vector.load %arg4[%c0_7, %c0_8, %c0_9] : memref<4x16x16xf32, #tpu.memory_space<vmem>>, vector<4x16x16xf32>
    tpu.vector_store %arg4[%c0_7, %c0_8, %c0_9], %20 {strides = array<i32>} : memref<4x16x16xf32, #tpu.memory_space<vmem>>, vector<4x16x16xf32>,
    return
  }
  func.func @transform_0(%arg0: i32) -> (i32, i32) {
    %c0_i32 = arith.constant 0 : i32
    %c0_i32_0 = arith.constant 0 : i32
    return %arg0, %c0_i32 : i32, i32
  }
  func.func @transform_1(%arg0: i32) -> (i32, i32) {
    %c0_i32 = arith.constant 0 : i32
    %c0_i32_0 = arith.constant 0 : i32
    %c0_i32_1 = arith.constant 0 : i32
    return %c0_i32, %c0_i32_0 : i32, i32
  }
  func.func @transform_2(%arg0: i32) -> (i32, i32) {
    %c0_i32 = arith.constant 0 : i32
    %c0_i32_0 = arith.constant 0 : i32
    %c0_i32_1 = arith.constant 0 : i32
    return %c0_i32, %c0_i32_0 : i32, i32
  }
  func.func @transform_3(%arg0: i32) -> (i32, i32, i32) {
    %c0_i32 = arith.constant 0 : i32
    %c0_i32_0 = arith.constant 0 : i32
    %c0_i32_1 = arith.constant 0 : i32
    return %arg0, %c0_i32, %c0_i32_0 : i32, i32, i32
  }
}

</mosaic_0001>

<llo_original>
// kernel: tpu_custom_call.1
$region0: #{tpu_custom_call.1}
  #allocation0 [shape = 'u32[]', space=smem, size = 0x4, offset = 0x4, fixed_abs, tag = 'smem constant byte address 0x4 - core index']
  #allocation1 [shape = 'u32[144,128]{1,0:T(1,128)}', space=vmem, size = 0x12000, scoped, tag = 'internal scratch']
  %s0 = inlined_call_operand.vmem [shape: bf16[128,16], index: 0, kind: input, shape index: {}]
  %s1 = inlined_call_operand.vmem [shape: bf16[16,32], index: 1, kind: input, shape index: {}]
  %s2 = inlined_call_operand.vmem [shape: bf16[32,16], index: 2, kind: input, shape index: {}]
  %s3 = inlined_call_operand.hbm [shape: f32[8,16,16], index: 3, kind: output, shape index: {}]
  %s4 = sld [smem:[#allocation0]]
  $region45: #{tpu_custom_call.1} parent=0
    _
  %s6 = ssub.s32 1, %s4
  %s7 = scalar_select 0, %s6, %s4
  $region1: #{tpu_custom_call.1} parent=0
    #allocation2 [shape = 'u8[65536]{0}', space=vmem, size = 0x10000, scoped, tag = 'output window, operand 0']
    #allocation3 [shape = 's32[2]{0}', space=sflag, size = 0x8, scoped, tag = 'scoped memory for tpu_custom_call.1']
    %8 = vsyncpa [#allocation3], 0
    %s9 = scalar_lea.sflag [#allocation3], 1
    %10 = vsyncpa %s9, 0
    loop: start=0, step=1, limit=4
    $region2: #{tpu_custom_call.1} parent=1 // loop_pre_header
      _
    $region3: #{tpu_custom_call.1} parent=1 // loop_header
      %s12 = sphi 0, %s16
      %p13 = scmp.ge.s32.totalorder %s12, 4
      %s22 = sphi 0, %s24
      %s25 = sphi 0, %s22
      %s26 = sphi 0, %s25
      %s42 = sphi 0, %s26
      %s46 = sphi 0, %s46
      %s48 = sphi 0, %s46
      %s49 = sphi 0, %s48
      %s63 = sphi 0, %s49
      %s67 = sphi 0, %s67
      %s69 = sphi 0, %s67
      %s70 = sphi 0, %s69
      %s84 = sphi 0, %s70
      %s90 = sphi 0, %s92
      %s93 = sphi 0, %s90
      %s94 = sphi 0, %s93
      %s110 = sphi 0, %s94
    $region4: #{tpu_custom_call.1} parent=1 // loop_header_branch
      %15 = sbr.rel (%p13) target = $region8
    $region5: #{tpu_custom_call.1} parent=1 // loop_body
      %s17 = ssub.s32 %s12, 1
      %s18 = ssub.s32 %s12, 2
      %s19 = sadd.s32 %s12, 1
      %s20 = ssub.s32 %s12, %s19
      %p21 = scmp.eq.s32.totalorder %s20, 0
      %s23 = sadd.s32 %s22, 1
      %s24 = scalar_select %p21, %s22, %s23
      %p27 = pneg %p21
      %p28 = scmp.eq.s32.totalorder %s12, 1
      %p29 = por %p27, %p28
      %p30 = scmp.ne.s32.totalorder %s22, %s25
      %p31 = scmp.eq.s32.totalorder %s12, 0
      %p32 = por %p30, %p31
      %p33 = scmp.ne.s32.totalorder %s22, %s25
      %p34 = scmp.eq.s32.totalorder %s17, 1
      %p35 = por %p33, %p34
      %p36 = scmp.ne.s32.totalorder %s25, %s26
      %p37 = scmp.eq.s32.totalorder %s17, 0
      %p38 = por %p36, %p37
      %p39 = scmp.ne.s32.totalorder %s25, %s26
      %p40 = scmp.eq.s32.totalorder %s18, 1
      %p41 = por %p39, %p40
      %p43 = scmp.ne.s32.totalorder %s26, %s42
      %p44 = scmp.eq.s32.totalorder %s18, 0
      %p45 = por %p43, %p44
      %s47 = sadd.s32 %s46, 1
      %p50 = scmp.eq.s32.totalorder %s12, 1
      %p51 = scmp.ne.s32.totalorder %s46, %s48
      %p52 = scmp.eq.s32.totalorder %s12, 0
      %p53 = por %p51, %p52
      %p54 = scmp.ne.s32.totalorder %s46, %s48
      %p55 = scmp.eq.s32.totalorder %s17, 1
      %p56 = por %p54, %p55
      %p57 = scmp.ne.s32.totalorder %s48, %s49
      %p58 = scmp.eq.s32.totalorder %s17, 0
      %p59 = por %p57, %p58
      %p60 = scmp.ne.s32.totalorder %s48, %s49
      %p61 = scmp.eq.s32.totalorder %s18, 1
      %p62 = por %p60, %p61
      %p64 = scmp.ne.s32.totalorder %s49, %s63
      %p65 = scmp.eq.s32.totalorder %s18, 0
      %p66 = por %p64, %p65
      %s68 = sadd.s32 %s67, 1
      %p71 = scmp.eq.s32.totalorder %s12, 1
      %p72 = scmp.ne.s32.totalorder %s67, %s69
      %p73 = scmp.eq.s32.totalorder %s12, 0
      %p74 = por %p72, %p73
      %p75 = scmp.ne.s32.totalorder %s67, %s69
      %p76 = scmp.eq.s32.totalorder %s17, 1
      %p77 = por %p75, %p76
      %p78 = scmp.ne.s32.totalorder %s69, %s70
      %p79 = scmp.eq.s32.totalorder %s17, 0
      %p80 = por %p78, %p79
      %p81 = scmp.ne.s32.totalorder %s69, %s70
      %p82 = scmp.eq.s32.totalorder %s18, 1
      %p83 = por %p81, %p82
      %p85 = scmp.ne.s32.totalorder %s70, %s84
      %p86 = scmp.eq.s32.totalorder %s18, 0
      %p87 = por %p85, %p86
      %s88 = ssub.s32 %s12, %s19
      %p89 = scmp.eq.s32.totalorder %s88, 0
      %s91 = sadd.s32 %s90, 1
      %s92 = scalar_select %p89, %s90, %s91
      %p95 = pneg %p89
      %p96 = scmp.eq.s32.totalorder %s12, 1
      %p97 = por %p95, %p96
      %p98 = scmp.ne.s32.totalorder %s90, %s93
      %p99 = scmp.eq.s32.totalorder %s12, 0
      %p100 = por %p98, %p99
      %p101 = scmp.ne.s32.totalorder %s90, %s93
      %p102 = scmp.eq.s32.totalorder %s17, 1
      %p103 = por %p101, %p102
      %p104 = scmp.ne.s32.totalorder %s93, %s94
      %p105 = scmp.eq.s32.totalorder %s17, 0
      %p106 = por %p104, %p105
      %p107 = scmp.ne.s32.totalorder %s93, %s94
      %p108 = scmp.eq.s32.totalorder %s18, 1
      %p109 = por %p107, %p108
      %p111 = scmp.ne.s32.totalorder %s94, %s110
      %p112 = scmp.eq.s32.totalorder %s18, 0
      %p113 = por %p111, %p112
      %p114 = scmp.le.s32.totalorder 1, %s12
      %p115 = scmp.lt.s32.totalorder %s12, 3
      %p116 = pnand %p114, %p115
      %p117 = pneg %p116
      // Predicated region
      $region9: #{tpu_custom_call.1} parent=5 // pred_check
        _
      $region10: #{tpu_custom_call.1} parent=5 // pred_check_branch
        %119 = sbr.rel (%p116) target = $region12
      $region11: #{tpu_custom_call.1} parent=5 // pred_region
        %s120 = ssub.s32 %s12, 1
        // Predicated region
        $region13: #{tpu_custom_call.1} parent=11 // pred_check
          %p121 = pneg %p59
        $region14: #{tpu_custom_call.1} parent=11 // pred_check_branch
          %123 = sbr.rel (%p121) target = $region16
        $region15: #{tpu_custom_call.1} parent=11 // pred_region
          _
        $region16: #{tpu_custom_call.1} parent=11 // pred_fallthru
          _
        // Predicated region
        $region17: #{tpu_custom_call.1} parent=11 // pred_check
          %p124 = pneg %p80
        $region18: #{tpu_custom_call.1} parent=11 // pred_check_branch
          %126 = sbr.rel (%p124) target = $region20
        $region19: #{tpu_custom_call.1} parent=11 // pred_region
          _
        $region20: #{tpu_custom_call.1} parent=11 // pred_fallthru
          _
      $region12: #{tpu_custom_call.1} parent=5 // pred_fallthru
        _
      %p127 = scmp.lt.s32.totalorder %s12, 2
      // Predicated region
      $region21: #{tpu_custom_call.1} parent=5 // pred_check
        %p128 = pneg %p127
      $region22: #{tpu_custom_call.1} parent=5 // pred_check_branch
        %130 = sbr.rel (%p128) target = $region24
      $region23: #{tpu_custom_call.1} parent=5 // pred_region
        // Predicated region
        $region25: #{tpu_custom_call.1} parent=23 // pred_check
          %p131 = pneg %p32
        $region26: #{tpu_custom_call.1} parent=23 // pred_check_branch
          %133 = sbr.rel (%p131) target = $region28
        $region27: #{tpu_custom_call.1} parent=23 // pred_region
          %s134 = smul.u32 8, %s12
          %p135 = scmp.lt.s32.totalorder %s134, 15
          %s136 = scalar_select %p135, %s134, 15
          %s137 = smul.addr %s136, 4
          %s138 = scalar_lea.vmem %s0, %s137
          %s139 = smul.u32 8, %s12
        $region28: #{tpu_custom_call.1} parent=23 // pred_fallthru
          _
      $region24: #{tpu_custom_call.1} parent=5 // pred_fallthru
        _
      %p140 = scmp.le.s32.totalorder 1, %s12
      %p141 = scmp.lt.s32.totalorder %s12, 3
      %p142 = pnand %p140, %p141
      %p143 = pneg %p142
      // Predicated region
      $region29: #{tpu_custom_call.1} parent=5 // pred_check
        _
      $region30: #{tpu_custom_call.1} parent=5 // pred_check_branch
        %145 = sbr.rel (%p142) target = $region32
      $region31: #{tpu_custom_call.1} parent=5 // pred_region
        %s146 = ssub.s32 %s12, 1
        %s147 = smul.u32 8, %s17
        %p148 = scmp.lt.s32.totalorder %s147, 15
        %s149 = scalar_select %p148, %s147, 15
        %s150 = smul.addr %s149, 4
        %s151 = scalar_lea.vmem %s0, %s150
        %p152 = pneg %p38
        %p153 = pneg %p35
        %p154 = pneg %p59
        %p155 = pneg %p56
        %p156 = pneg %p80
        %p157 = pneg %p77
        %p158 = pneg %p106
        %p159 = pneg %p103
        %s160 = sand.u32 %s93, 1
        %s161 = scalar_lea.sflag [#allocation3], %s160
        %s162 = sand.u32 %s93, 1
        %s163 = smul.addr %s162, 64
        %s164 = scalar_lea.vmem [#allocation2], %s163
        %s165 = smul.u32 8, %s17
        %p166 = scmp.lt.s32.totalorder %s165, 15
        %s167 = scalar_select %p166, %s165, 15
        %s168 = smul.addr %s167, 4
        %s169 = scalar_lea.vmem %s0, %s168
        %s170 = smul.u32 8, %s17
        %s171 = smul.u32 4, %s17
        %v173 = vld [vmem:[%s169] sm:$0xf]
        %v174 = vld [vmem:[%s169 + $0x4] sm:$0xf]
        %v175 = vld [vmem:[%s169 + $0x8] sm:$0xf]
        %v176 = vld [vmem:[%s169 + $0xc] sm:$0xf]
        %v177 = vld [vmem:[%s169 + $0x10] sm:$0xf]
        %v178 = vld [vmem:[%s169 + $0x14] sm:$0xf]
        %v179 = vld [vmem:[%s169 + $0x18] sm:$0xf]
        %v180 = vld [vmem:[%s169 + $0x1c] sm:$0xf]
        %v181 = vld [vmem:[%s1] sm:$0xf]
        %v182 = vld [vmem:[%s1 + $0x4] sm:$0xf]
        %v191 = vunpack.c.l.b16 %v173
        %v192 = vunpack.c.l.b16 %v174
        %v193 = vunpack.c.l.b16 %v175
        %v194 = vunpack.c.l.b16 %v176
        %v195 = vunpack.c.l.b16 %v177
        %v196 = vunpack.c.l.b16 %v178
        %v197 = vunpack.c.l.b16 %v179
        %v198 = vunpack.c.l.b16 %v180
        %v199 = vpack.c.b16 %v192, %v191
        %v200 = vpack.c.b16 %v194, %v193
        %v201 = vpack.c.b16 %v196, %v195
        %v202 = vpack.c.b16 %v198, %v197
        %v205 = vunpack.c.l.b16 %v181
        %v206 = vunpack.c.l.b16 %v182
        %v207 = vpack.c.b16 %v206, %v205
        %vm209 = vcmask 130048
        %v211 = vsel %vm209, %v199, 0
        %v214 = vsel %vm209, %v200, 0
        %v217 = vsel %vm209, %v201, 0
        %v220 = vsel %vm209, %v202, 0
        %222 = vmatprep.subr.bf16.mxu0 0
        %223 = vmatpush1.bf16.msra.mxu0 0
        %224 = vmatprep.subr.bf16.mxu0 0
        %225 = vmatpush1.bf16.msra.mxu0 0
        %226 = vmatprep.subr.bf16.mxu0 0
        %227 = vmatpush1.bf16.msra.mxu0 0
        %228 = vmatprep.subr.bf16.mxu0 0
        %229 = vmatpush1.bf16.msra.mxu0 0
        %230 = vmatprep.subr.bf16.mxu0 0
        %231 = vmatpush1.bf16.msra.mxu0 0
        %232 = vmatprep.subr.bf16.mxu0 0
        %233 = vmatpush1.bf16.msra.mxu0 0
        %234 = vmatprep.subr.bf16.mxu0 0
        %235 = vmatpush1.bf16.msra.mxu0 0
        %236 = vmatprep.subr.bf16.mxu0 0
        %237 = vmatpush1.bf16.msra.mxu0 %v207
        %238 = vmatprep.subr.bf16.mxu0 0
        %239 = vmatpush2.bf16.msra.mxu0 0
        %240 = vmatprep.subr.bf16.mxu0 0
        %241 = vmatpush2.bf16.msra.mxu0 0
        %242 = vmatprep.subr.bf16.mxu0 0
        %243 = vmatpush2.bf16.msra.mxu0 0
        %244 = vmatprep.subr.bf16.mxu0 0
        %245 = vmatpush2.bf16.msra.mxu0 0
        %246 = vmatprep.subr.bf16.mxu0 0
        %247 = vmatpush2.bf16.msra.mxu0 0
        %248 = vmatprep.subr.bf16.mxu0 0
        %249 = vmatpush2.bf16.msra.mxu0 0
        %250 = vmatprep.subr.bf16.mxu0 0
        %251 = vmatpush2.bf16.msra.mxu0 0
        %252 = vmatprep.subr.bf16.mxu0 0
        %253 = vmatpush2.bf16.msra.mxu0 0
        %254 = vmatprep.mubr.bf16.mxu0 0
        %255 = vmatmul.mubr.bf16.gmra.mxu0 %v211
        %v256 = vpop.f32.mrf.mxu0
        %v257 = vadd.f32 0.0, %v256
        %v258 = vpop.f32.mrf.mxu0
        %v259 = vpop.f32.mrf.mxu0
        %v260 = vadd.f32 0.0, %v259
        %v261 = vpop.f32.mrf.mxu0
        %262 = vmatprep.mubr.bf16.mxu0 0
        %263 = vmatmul.mubr.bf16.gmra.mxu0 %v214
        %v264 = vpop.f32.mrf.mxu0
        %v265 = vadd.f32 0.0, %v264
        %v266 = vpop.f32.mrf.mxu0
        %v267 = vpop.f32.mrf.mxu0
        %v268 = vadd.f32 0.0, %v267
        %v269 = vpop.f32.mrf.mxu0
        %270 = vmatprep.mubr.bf16.mxu0 0
        %271 = vmatmul.mubr.bf16.gmra.mxu0 %v217
        %v272 = vpop.f32.mrf.mxu0
        %v273 = vadd.f32 0.0, %v272
        %v274 = vpop.f32.mrf.mxu0
        %v275 = vpop.f32.mrf.mxu0
        %v276 = vadd.f32 0.0, %v275
        %v277 = vpop.f32.mrf.mxu0
        %278 = vmatprep.mubr.bf16.mxu0 0
        %279 = vmatmul.mubr.bf16.gmra.mxu0 %v220
        %v280 = vpop.f32.mrf.mxu0
        %v281 = vadd.f32 0.0, %v280
        %v282 = vpop.f32.mrf.mxu0
        %v283 = vpop.f32.mrf.mxu0
        %v284 = vadd.f32 0.0, %v283
        %v285 = vpop.f32.mrf.mxu0
        %286 = vdwg.mxu0
        %v287 = vpack.c.bf16 %v260, %v257
        %v288 = vpack.c.bf16 %v268, %v265
        %v289 = vpack.c.bf16 %v276, %v273
        %v290 = vpack.c.bf16 %v284, %v281
        %v291 = vld [vmem:[%s2] sm:$0xf]
        %v292 = vld [vmem:[%s2 + $0x4] sm:$0xf]
        %v293 = vld [vmem:[%s2 + $0x8] sm:$0xf]
        %v294 = vld [vmem:[%s2 + $0xc] sm:$0xf]
        %v299 = vunpack.c.l.b16 %v291
        %v300 = vunpack.c.l.b16 %v292
        %v301 = vunpack.c.l.b16 %v293
        %v302 = vunpack.c.l.b16 %v294
        %v303 = vpack.c.b16 %v300, %v299
        %v304 = vpack.c.b16 %v302, %v301
        %v306 = vsel %vm209, %v303, 0
        %v309 = vsel %vm209, %v304, 0
        %311 = vmatprep.subr.bf16.mxu0 0
        %312 = vmatpush1.bf16.msra.mxu0 0
        %313 = vmatprep.subr.bf16.mxu0 0
        %314 = vmatpush1.bf16.msra.mxu0 0
        %315 = vmatprep.subr.bf16.mxu0 0
        %316 = vmatpush1.bf16.msra.mxu0 0
        %317 = vmatprep.subr.bf16.mxu0 0
        %318 = vmatpush1.bf16.msra.mxu0 0
        %319 = vmatprep.subr.bf16.mxu0 0
        %320 = vmatpush1.bf16.msra.mxu0 0
        %321 = vmatprep.subr.bf16.mxu0 0
        %322 = vmatpush1.bf16.msra.mxu0 0
        %323 = vmatprep.subr.bf16.mxu0 0
        %324 = vmatpush1.bf16.msra.mxu0 0
        %325 = vmatprep.subr.bf16.mxu0 0
        %326 = vmatpush1.bf16.msra.mxu0 %v287
        %327 = vmatprep.subr.bf16.mxu0 0
        %328 = vmatpush2.bf16.msra.mxu0 0
        %329 = vmatprep.subr.bf16.mxu0 0
        %330 = vmatpush2.bf16.msra.mxu0 0
        %331 = vmatprep.subr.bf16.mxu0 0
        %332 = vmatpush2.bf16.msra.mxu0 0
        %333 = vmatprep.subr.bf16.mxu0 0
        %334 = vmatpush2.bf16.msra.mxu0 0
        %335 = vmatprep.subr.bf16.mxu0 0
        %336 = vmatpush2.bf16.msra.mxu0 0
        %337 = vmatprep.subr.bf16.mxu0 0
        %338 = vmatpush2.bf16.msra.mxu0 0
        %339 = vmatprep.subr.bf16.mxu0 0
        %340 = vmatpush2.bf16.msra.mxu0 0
        %341 = vmatprep.subr.bf16.mxu0 0
        %342 = vmatpush2.bf16.msra.mxu0 0
        %343 = vmatprep.mubr.bf16.mxu0 0
        %344 = vmatmul.mubr.bf16.gmra.mxu0 %v306
        %v345 = vpop.f32.mrf.mxu0
        %v346 = vadd.f32 0.0, %v345
        %v347 = vpop.f32.mrf.mxu0
        %v348 = vpop.f32.mrf.mxu0
        %v349 = vadd.f32 0.0, %v348
        %v350 = vpop.f32.mrf.mxu0
        %351 = vmatprep.mubr.bf16.mxu0 0
        %352 = vmatmul.mubr.bf16.gmra.mxu0 %v309
        %v353 = vpop.f32.mrf.mxu0
        %v354 = vadd.f32 0.0, %v353
        %v355 = vpop.f32.mrf.mxu0
        %v356 = vpop.f32.mrf.mxu0
        %v357 = vadd.f32 0.0, %v356
        %v358 = vpop.f32.mrf.mxu0
        %359 = vdwg.mxu0
        %360 = vmatprep.subr.bf16.mxu0 0
        %361 = vmatpush1.bf16.msra.mxu0 0
        %362 = vmatprep.subr.bf16.mxu0 0
        %363 = vmatpush1.bf16.msra.mxu0 0
        %364 = vmatprep.subr.bf16.mxu0 0
        %365 = vmatpush1.bf16.msra.mxu0 0
        %366 = vmatprep.subr.bf16.mxu0 0
        %367 = vmatpush1.bf16.msra.mxu0 0
        %368 = vmatprep.subr.bf16.mxu0 0
        %369 = vmatpush1.bf16.msra.mxu0 0
        %370 = vmatprep.subr.bf16.mxu0 0
        %371 = vmatpush1.bf16.msra.mxu0 0
        %372 = vmatprep.subr.bf16.mxu0 0
        %373 = vmatpush1.bf16.msra.mxu0 0
        %374 = vmatprep.subr.bf16.mxu0 0
        %375 = vmatpush1.bf16.msra.mxu0 %v288
        %376 = vmatprep.subr.bf16.mxu0 0
        %377 = vmatpush2.bf16.msra.mxu0 0
        %378 = vmatprep.subr.bf16.mxu0 0
        %379 = vmatpush2.bf16.msra.mxu0 0
        %380 = vmatprep.subr.bf16.mxu0 0
        %381 = vmatpush2.bf16.msra.mxu0 0
        %382 = vmatprep.subr.bf16.mxu0 0
        %383 = vmatpush2.bf16.msra.mxu0 0
        %384 = vmatprep.subr.bf16.mxu0 0
        %385 = vmatpush2.bf16.msra.mxu0 0
        %386 = vmatprep.subr.bf16.mxu0 0
        %387 = vmatpush2.bf16.msra.mxu0 0
        %388 = vmatprep.subr.bf16.mxu0 0
        %389 = vmatpush2.bf16.msra.mxu0 0
        %390 = vmatprep.subr.bf16.mxu0 0
        %391 = vmatpush2.bf16.msra.mxu0 0
        %392 = vmatprep.mubr.bf16.mxu0 0
        %393 = vmatmul.mubr.bf16.gmra.mxu0 %v306
        %v394 = vpop.f32.mrf.mxu0
        %v395 = vadd.f32 0.0, %v394
        %v396 = vpop.f32.mrf.mxu0
        %v397 = vpop.f32.mrf.mxu0
        %v398 = vadd.f32 0.0, %v397
        %v399 = vpop.f32.mrf.mxu0
        %400 = vmatprep.mubr.bf16.mxu0 0
        %401 = vmatmul.mubr.bf16.gmra.mxu0 %v309
        %v402 = vpop.f32.mrf.mxu0
        %v403 = vadd.f32 0.0, %v402
        %v404 = vpop.f32.mrf.mxu0
        %v405 = vpop.f32.mrf.mxu0
        %v406 = vadd.f32 0.0, %v405
        %v407 = vpop.f32.mrf.mxu0
        %408 = vdwg.mxu0
        %409 = vmatprep.subr.bf16.mxu0 0
        %410 = vmatpush1.bf16.msra.mxu0 0
        %411 = vmatprep.subr.bf16.mxu0 0
        %412 = vmatpush1.bf16.msra.mxu0 0
        %413 = vmatprep.subr.bf16.mxu0 0
        %414 = vmatpush1.bf16.msra.mxu0 0
        %415 = vmatprep.subr.bf16.mxu0 0
        %416 = vmatpush1.bf16.msra.mxu0 0
        %417 = vmatprep.subr.bf16.mxu0 0
        %418 = vmatpush1.bf16.msra.mxu0 0
        %419 = vmatprep.subr.bf16.mxu0 0
        %420 = vmatpush1.bf16.msra.mxu0 0
        %421 = vmatprep.subr.bf16.mxu0 0
        %422 = vmatpush1.bf16.msra.mxu0 0
        %423 = vmatprep.subr.bf16.mxu0 0
        %424 = vmatpush1.bf16.msra.mxu0 %v289
        %425 = vmatprep.subr.bf16.mxu0 0
        %426 = vmatpush2.bf16.msra.mxu0 0
        %427 = vmatprep.subr.bf16.mxu0 0
        %428 = vmatpush2.bf16.msra.mxu0 0
        %429 = vmatprep.subr.bf16.mxu0 0
        %430 = vmatpush2.bf16.msra.mxu0 0
        %431 = vmatprep.subr.bf16.mxu0 0
        %432 = vmatpush2.bf16.msra.mxu0 0
        %433 = vmatprep.subr.bf16.mxu0 0
        %434 = vmatpush2.bf16.msra.mxu0 0
        %435 = vmatprep.subr.bf16.mxu0 0
        %436 = vmatpush2.bf16.msra.mxu0 0
        %437 = vmatprep.subr.bf16.mxu0 0
        %438 = vmatpush2.bf16.msra.mxu0 0
        %439 = vmatprep.subr.bf16.mxu0 0
        %440 = vmatpush2.bf16.msra.mxu0 0
        %441 = vmatprep.mubr.bf16.mxu0 0
        %442 = vmatmul.mubr.bf16.gmra.mxu0 %v306
        %v443 = vpop.f32.mrf.mxu0
        %v444 = vadd.f32 0.0, %v443
        %v445 = vpop.f32.mrf.mxu0
        %v446 = vpop.f32.mrf.mxu0
        %v447 = vadd.f32 0.0, %v446
        %v448 = vpop.f32.mrf.mxu0
        %449 = vmatprep.mubr.bf16.mxu0 0
        %450 = vmatmul.mubr.bf16.gmra.mxu0 %v309
        %v451 = vpop.f32.mrf.mxu0
        %v452 = vadd.f32 0.0, %v451
        %v453 = vpop.f32.mrf.mxu0
        %v454 = vpop.f32.mrf.mxu0
        %v455 = vadd.f32 0.0, %v454
        %v456 = vpop.f32.mrf.mxu0
        %457 = vdwg.mxu0
        %458 = vmatprep.subr.bf16.mxu0 0
        %459 = vmatpush1.bf16.msra.mxu0 0
        %460 = vmatprep.subr.bf16.mxu0 0
        %461 = vmatpush1.bf16.msra.mxu0 0
        %462 = vmatprep.subr.bf16.mxu0 0
        %463 = vmatpush1.bf16.msra.mxu0 0
        %464 = vmatprep.subr.bf16.mxu0 0
        %465 = vmatpush1.bf16.msra.mxu0 0
        %466 = vmatprep.subr.bf16.mxu0 0
        %467 = vmatpush1.bf16.msra.mxu0 0
        %468 = vmatprep.subr.bf16.mxu0 0
        %469 = vmatpush1.bf16.msra.mxu0 0
        %470 = vmatprep.subr.bf16.mxu0 0
        %471 = vmatpush1.bf16.msra.mxu0 0
        %472 = vmatprep.subr.bf16.mxu0 0
        %473 = vmatpush1.bf16.msra.mxu0 %v290
        %474 = vmatprep.subr.bf16.mxu0 0
        %475 = vmatpush2.bf16.msra.mxu0 0
        %476 = vmatprep.subr.bf16.mxu0 0
        %477 = vmatpush2.bf16.msra.mxu0 0
        %478 = vmatprep.subr.bf16.mxu0 0
        %479 = vmatpush2.bf16.msra.mxu0 0
        %480 = vmatprep.subr.bf16.mxu0 0
        %481 = vmatpush2.bf16.msra.mxu0 0
        %482 = vmatprep.subr.bf16.mxu0 0
        %483 = vmatpush2.bf16.msra.mxu0 0
        %484 = vmatprep.subr.bf16.mxu0 0
        %485 = vmatpush2.bf16.msra.mxu0 0
        %486 = vmatprep.subr.bf16.mxu0 0
        %487 = vmatpush2.bf16.msra.mxu0 0
        %488 = vmatprep.subr.bf16.mxu0 0
        %489 = vmatpush2.bf16.msra.mxu0 0
        %490 = vmatprep.mubr.bf16.mxu0 0
        %491 = vmatmul.mubr.bf16.gmra.mxu0 %v306
        %v492 = vpop.f32.mrf.mxu0
        %v493 = vadd.f32 0.0, %v492
        %v494 = vpop.f32.mrf.mxu0
        %v495 = vpop.f32.mrf.mxu0
        %v496 = vadd.f32 0.0, %v495
        %v497 = vpop.f32.mrf.mxu0
        %498 = vmatprep.mubr.bf16.mxu0 0
        %499 = vmatmul.mubr.bf16.gmra.mxu0 %v309
        %v500 = vpop.f32.mrf.mxu0
        %v501 = vadd.f32 0.0, %v500
        %v502 = vpop.f32.mrf.mxu0
        %v503 = vpop.f32.mrf.mxu0
        %v504 = vadd.f32 0.0, %v503
        %v505 = vpop.f32.mrf.mxu0
        %506 = vdwg.mxu0
        %515 = vrot.lane.b32.xlu0 %v354, 112
        %v516 = vpop.permute.xlu0 %515
        %517 = vrot.lane.b32.xlu0 %v357, 112
        %v518 = vpop.permute.xlu0 %517
        %519 = vrot.lane.b32.xlu0 %v403, 112
        %v520 = vpop.permute.xlu0 %519
        %521 = vrot.lane.b32.xlu0 %v406, 112
        %v522 = vpop.permute.xlu0 %521
        %523 = vrot.lane.b32.xlu0 %v452, 112
        %v524 = vpop.permute.xlu0 %523
        %525 = vrot.lane.b32.xlu0 %v455, 112
        %v526 = vpop.permute.xlu0 %525
        %527 = vrot.lane.b32.xlu0 %v501, 112
        %v528 = vpop.permute.xlu0 %527
        %529 = vrot.lane.b32.xlu0 %v504, 112
        %v530 = vpop.permute.xlu0 %529
        %v539 = vsub.f32 %v346, %v516
        %v540 = vsub.f32 %v349, %v518
        %v541 = vsub.f32 %v395, %v520
        %v542 = vsub.f32 %v398, %v522
        %v543 = vsub.f32 %v444, %v524
        %v544 = vsub.f32 %v447, %v526
        %v545 = vsub.f32 %v493, %v528
        %v546 = vsub.f32 %v496, %v530
        %547 = vrot.lane.b32.xlu0 %v354, 16
        %v548 = vpop.permute.xlu0 %547
        %549 = vrot.lane.b32.xlu0 %v357, 16
        %v550 = vpop.permute.xlu0 %549
        %551 = vrot.lane.b32.xlu0 %v403, 16
        %v552 = vpop.permute.xlu0 %551
        %553 = vrot.lane.b32.xlu0 %v406, 16
        %v554 = vpop.permute.xlu0 %553
        %555 = vrot.lane.b32.xlu0 %v452, 16
        %v556 = vpop.permute.xlu0 %555
        %557 = vrot.lane.b32.xlu0 %v455, 16
        %v558 = vpop.permute.xlu0 %557
        %559 = vrot.lane.b32.xlu0 %v501, 16
        %v560 = vpop.permute.xlu0 %559
        %561 = vrot.lane.b32.xlu0 %v504, 16
        %v562 = vpop.permute.xlu0 %561
        %v571 = vadd.f32 %v346, %v548
        %v572 = vadd.f32 %v349, %v550
        %v573 = vadd.f32 %v395, %v552
        %v574 = vadd.f32 %v398, %v554
        %v575 = vadd.f32 %v444, %v556
        %v576 = vadd.f32 %v447, %v558
        %v577 = vadd.f32 %v493, %v560
        %v578 = vadd.f32 %v496, %v562
        %v579 = vmul.f32 %v539, %v539
        %v580 = vmul.f32 %v540, %v540
        %v581 = vmul.f32 %v541, %v541
        %v582 = vmul.f32 %v542, %v542
        %v583 = vmul.f32 %v543, %v543
        %v584 = vmul.f32 %v544, %v544
        %v585 = vmul.f32 %v545, %v545
        %v586 = vmul.f32 %v546, %v546
        %v587 = vmul.f32 %v571, %v571
        %v588 = vmul.f32 %v572, %v572
        %v589 = vmul.f32 %v573, %v573
        %v590 = vmul.f32 %v574, %v574
        %v591 = vmul.f32 %v575, %v575
        %v592 = vmul.f32 %v576, %v576
        %v593 = vmul.f32 %v577, %v577
        %v594 = vmul.f32 %v578, %v578
        %603 = vrot.lane.b32.xlu0 %v587, 112
        %v604 = vpop.permute.xlu0 %603
        %605 = vrot.lane.b32.xlu0 %v588, 112
        %v606 = vpop.permute.xlu0 %605
        %607 = vrot.lane.b32.xlu0 %v589, 112
        %v608 = vpop.permute.xlu0 %607
        %609 = vrot.lane.b32.xlu0 %v590, 112
        %v610 = vpop.permute.xlu0 %609
        %611 = vrot.lane.b32.xlu0 %v591, 112
        %v612 = vpop.permute.xlu0 %611
        %613 = vrot.lane.b32.xlu0 %v592, 112
        %v614 = vpop.permute.xlu0 %613
        %615 = vrot.lane.b32.xlu0 %v593, 112
        %v616 = vpop.permute.xlu0 %615
        %617 = vrot.lane.b32.xlu0 %v594, 112
        %v618 = vpop.permute.xlu0 %617
        %v627 = vadd.f32 %v579, %v604
        %v628 = vadd.f32 %v580, %v606
        %v629 = vadd.f32 %v581, %v608
        %v630 = vadd.f32 %v582, %v610
        %v631 = vadd.f32 %v583, %v612
        %v632 = vadd.f32 %v584, %v614
        %v633 = vadd.f32 %v585, %v616
        %v634 = vadd.f32 %v586, %v618
        %v635 = vadd.f32 %v627, 1e-15
        %v636 = vadd.f32 %v628, 1e-15
        %v637 = vadd.f32 %v629, 1e-15
        %v638 = vadd.f32 %v630, 1e-15
        %v639 = vadd.f32 %v631, 1e-15
        %v640 = vadd.f32 %v632, 1e-15
        %v641 = vadd.f32 %v633, 1e-15
        %v642 = vadd.f32 %v634, 1e-15
        %v643 = vrsqrt.pop %v635
        %v644 = vmul.f32 %v635, %v643
        %vm645 = vcmp.eq.f32.partialorder %v635, inf
        %v646 = vsel %vm645, %v635, %v644
        %vm647 = vcmp.eq.f32.partialorder %v635, 0.0
        %v648 = vand.u32 %v635, 2147483648
        %v649 = vsel %vm647, %v648, %v646
        %v650 = vrsqrt.pop %v636
        %v651 = vmul.f32 %v636, %v650
        %vm652 = vcmp.eq.f32.partialorder %v636, inf
        %v653 = vsel %vm652, %v636, %v651
        %vm654 = vcmp.eq.f32.partialorder %v636, 0.0
        %v655 = vand.u32 %v636, 2147483648
        %v656 = vsel %vm654, %v655, %v653
        %v657 = vrsqrt.pop %v637
        %v658 = vmul.f32 %v637, %v657
        %vm659 = vcmp.eq.f32.partialorder %v637, inf
        %v660 = vsel %vm659, %v637, %v658
        %vm661 = vcmp.eq.f32.partialorder %v637, 0.0
        %v662 = vand.u32 %v637, 2147483648
        %v663 = vsel %vm661, %v662, %v660
        %v664 = vrsqrt.pop %v638
        %v665 = vmul.f32 %v638, %v664
        %vm666 = vcmp.eq.f32.partialorder %v638, inf
        %v667 = vsel %vm666, %v638, %v665
        %vm668 = vcmp.eq.f32.partialorder %v638, 0.0
        %v669 = vand.u32 %v638, 2147483648
        %v670 = vsel %vm668, %v669, %v667
        %v671 = vrsqrt.pop %v639
        %v672 = vmul.f32 %v639, %v671
        %vm673 = vcmp.eq.f32.partialorder %v639, inf
        %v674 = vsel %vm673, %v639, %v672
        %vm675 = vcmp.eq.f32.partialorder %v639, 0.0
        %v676 = vand.u32 %v639, 2147483648
        %v677 = vsel %vm675, %v676, %v674
        %v678 = vrsqrt.pop %v640
        %v679 = vmul.f32 %v640, %v678
        %vm680 = vcmp.eq.f32.partialorder %v640, inf
        %v681 = vsel %vm680, %v640, %v679
        %vm682 = vcmp.eq.f32.partialorder %v640, 0.0
        %v683 = vand.u32 %v640, 2147483648
        %v684 = vsel %vm682, %v683, %v681
        %v685 = vrsqrt.pop %v641
        %v686 = vmul.f32 %v641, %v685
        %vm687 = vcmp.eq.f32.partialorder %v641, inf
        %v688 = vsel %vm687, %v641, %v686
        %vm689 = vcmp.eq.f32.partialorder %v641, 0.0
        %v690 = vand.u32 %v641, 2147483648
        %v691 = vsel %vm689, %v690, %v688
        %v692 = vrsqrt.pop %v642
        %v693 = vmul.f32 %v642, %v692
        %vm694 = vcmp.eq.f32.partialorder %v642, inf
        %v695 = vsel %vm694, %v642, %v693
        %vm696 = vcmp.eq.f32.partialorder %v642, 0.0
        %v697 = vand.u32 %v642, 2147483648
        %v698 = vsel %vm696, %v697, %v695
        %699 = vst.msk [vmem:[%s164] sm:$0xff] %vm209, %v649
        %700 = vst.msk [vmem:[%s164 + $0x8] sm:$0xff] %vm209, %v656
        %701 = vst.msk [vmem:[%s164 + $0x10] sm:$0xff] %vm209, %v663
        %702 = vst.msk [vmem:[%s164 + $0x18] sm:$0xff] %vm209, %v670
        %703 = vst.msk [vmem:[%s164 + $0x20] sm:$0xff] %vm209, %v677
        %704 = vst.msk [vmem:[%s164 + $0x28] sm:$0xff] %vm209, %v684
        %705 = vst.msk [vmem:[%s164 + $0x30] sm:$0xff] %vm209, %v691
        %706 = vst.msk [vmem:[%s164 + $0x38] sm:$0xff] %vm209, %v698
        %s707 = sand.u32 %s93, 1
        %s708 = scalar_lea.sflag [#allocation3], %s707
        %s709 = sand.u32 %s93, 1
        %s710 = smul.addr %s709, 64
        %s711 = scalar_lea.vmem [#allocation2], %s710
        // Predicated region
        $region33: #{tpu_custom_call.1} parent=31 // pred_check
          %p712 = pneg %p103
        $region34: #{tpu_custom_call.1} parent=31 // pred_check_branch
          %714 = sbr.rel (%p712) target = $region36
        $region35: #{tpu_custom_call.1} parent=31 // pred_region
          %s715 = smul.u32 4, %s17
          %s717 = ssub.s32 1024, 1024
          %718 = vsyncadd %s708, %s717
          %s719 = smul.addr %s715, 2
          %s720 = smul.addr %s719, 128
          %s721 = scalar_lea.hbm %s3, %s720
          %s722 = sshll.u32 %s711, 4
          %s723 = int_to_ptr.vmem [resolvable:$true] %s722
          %728 = dma.vmem_to_hbm [thread:$0]  %s723, 1024, %s721, %s708, 128, 128, 8
        $region36: #{tpu_custom_call.1} parent=31 // pred_fallthru
          _
      $region32: #{tpu_custom_call.1} parent=5 // pred_fallthru
        _
      %p729 = scmp.le.s32.totalorder 2, %s12
      // Predicated region
      $region37: #{tpu_custom_call.1} parent=5 // pred_check
        %p730 = pneg %p729
      $region38: #{tpu_custom_call.1} parent=5 // pred_check_branch
        %732 = sbr.rel (%p730) target = $region40
      $region39: #{tpu_custom_call.1} parent=5 // pred_region
        %s733 = ssub.s32 %s12, 2
        // Predicated region
        $region41: #{tpu_custom_call.1} parent=39 // pred_check
          %p734 = pneg %p109
        $region42: #{tpu_custom_call.1} parent=39 // pred_check_branch
          %736 = sbr.rel (%p734) target = $region44
        $region43: #{tpu_custom_call.1} parent=39 // pred_region
          %s737 = sand.u32 %s94, 1
          %s738 = scalar_lea.sflag [#allocation3], %s737
          %s739 = sand.u32 %s94, 1
          %s740 = smul.addr %s739, 64
          %s741 = scalar_lea.vmem [#allocation2], %s740
          %742 = dma.done %s738, 1024
        $region44: #{tpu_custom_call.1} parent=39 // pred_fallthru
          _
      $region40: #{tpu_custom_call.1} parent=5 // pred_fallthru
        _
    $region6: #{tpu_custom_call.1} parent=1 // loop_footer
      %s16 = sadd.s32 1, %s12
    $region7: #{tpu_custom_call.1} parent=1 // loop_footer_branch
      %11 = sbr.rel target = $region3
    $region8: #{tpu_custom_call.1} parent=1 // loop_exit
      _
    %743 = vsyncpa [#allocation3], 1
    %s744 = scalar_lea.sflag [#allocation3], 1
    %745 = vsyncpa %s744, 1

</llo_original>
